<compile_context>
chip_gen: v5e
topology: v5e:2x2
jax: 0.10.0
libtpu: 0.0.40
codegen_flags: <defaults>
</compile_context>

<pallas_src>
import jax
import jax.numpy as jnp
from jax import lax
from jax.experimental import pallas as pl
from jax.experimental.pallas import tpu as pltpu


# ----------------------------- problem sizes -----------------------------
N = 3                # nodes per graph
F_IN = 16            # in_channels
C = 8                # out_channels per head
H = 2                # heads (fc input dim = out_channels * 2  =>  heads = 2)
NUM_CLASSES = 3
N_PAD = 8            # nodes padded to a sublane multiple
NEG_SLOPE = 0.2      # PyG GATConv default LeakyReLU slope
B = 4                # batch of graphs (stacked along the sublane axis)
GRAPHS_PER_STEP = 4  # = B -> single grid step; raise the step count for large B / v7x
LANES = 128          # lane-dense padded class / parameter width

# ------------------------ packed parameter slab layout -------------------
ROW_WFUSED = 0                   # rows [0, 16):  [W_head0 | W_head1 | u_dst_h0 | u_dst_h1], rest 0
ROW_USRC = F_IN                  # rows [16, 18): per-head source-attention rows (cols 0:16)
ROW_BGAT = F_IN + H              # row  18:       GATConv bias (cols 0:16)
ROW_BFC = ROW_BGAT + 1           # row  19:       fc bias (cols 0:3), padded classes = -1e30
ROW_WFC = 24                     # rows [24, 40): fc weight, 8-aligned so each head is one (8,128) tile
P_ROWS = ROW_WFC + H * C         # 40

# Contract the last (feature) dim of both operands:  lhs @ rhs.T  on the MXU.
_TRANS_B_DIMS = (((1,), (1,)), ((), ()))


def gat_model_kernel(x_ref, mask_ref, p_ref, o_ref):
    """Forward pass for a stack of graphs (one grid step); everything lives in VMEM."""
    x = x_ref[...]          # [R, F_in]   stacked node features
    mask = mask_ref[...]    # [R, R]      block-diagonal additive bias: 0 on edges, -1e30 elsewhere
    rows = x.shape[0]

    # One fused, lane-dense MXU push: cols [0:HC) = per-head projections,
    # [HC:HC+H) = per-head destination attention scores, remaining lanes are zero.
    fused = jnp.dot(x, p_ref[ROW_WFUSED:ROW_WFUSED + F_IN, :],
                    preferred_element_type=jnp.float32)                      # [R, 128]

    # Source attention scores for both heads directly in [H, R] (row) layout: no transpose.
    usrc = p_ref[ROW_USRC:ROW_USRC + H, 0:F_IN]                              # [H, F_in]
    a_src = lax.dot_general(usrc, x, _TRANS_B_DIMS,
                            preferred_element_type=jnp.float32)              # [H, R]

    bgat = p_ref[ROW_BGAT:ROW_BGAT + 1, 0:H * C]                             # [1, H*C]

    # Start from the fc bias (padded class lanes carry -1e30 so log_softmax ignores them).
    logits = jnp.broadcast_to(p_ref[ROW_BFC:ROW_BFC + 1, :], (rows, LANES))  # [R, 128]

    for h in range(H):                                    # static, unrolled over heads
        xp = fused[:, h * C:(h + 1) * C]                  # [R, C]   head projection
        a_dst = fused[:, H * C + h:H * C + h + 1]         # [R, 1]
        e = a_dst + a_src[h:h + 1, :]                     # [R, R], e[i,j] = a_dst[i] + a_src[j]
        e = jnp.maximum(e, NEG_SLOPE * e) + mask          # LeakyReLU(0.2) + additive mask

        m = jnp.max(e, axis=1, keepdims=True)             # row softmax over sources
        p = jnp.exp(e - m)
        s = jnp.sum(p, axis=1, keepdims=True)
        # Unnormalized aggregation first; defer the divide onto the small [R, C] result.
        agg = jnp.dot(p, xp, preferred_element_type=jnp.float32)             # [R, C]
        inv = pl.reciprocal(s, approx=True)               # EUP slot
        inv = inv * (2.0 - s * inv)                       # one Newton step -> ~f32 accuracy

        gat_h = jnp.maximum(agg * inv + bgat[:, h * C:(h + 1) * C], 0.0)     # ReLU
        # TODO(synk): F.dropout(p=0.5, training=self.training) treated as eval-mode identity.

        wfc_h = p_ref[ROW_WFC + h * C:ROW_WFC + (h + 1) * C, :]              # [C, 128]
        logits = logits + jnp.dot(gat_h, wfc_h, preferred_element_type=jnp.float32)

    # log_softmax over classes; padded lanes hold -1e30 logits so they contribute exp(.) = 0.
    lm = jnp.max(logits, axis=1, keepdims=True)
    z = logits - lm
    lse = jnp.log(jnp.sum(jnp.exp(z), axis=1, keepdims=True))
    o_ref[...] = z - lse                                  # lane-dense [R, 128] store


def pack_params(W, att_src, att_dst, bgat, wfc_t, bfc):
    """Fold GATConv/fc parameters into one zero-padded lane-dense [P_ROWS, 128] slab."""
    Wh = W.T.reshape(F_IN, H, C)                              # [F_in, H, C]
    udst_cols = jnp.einsum("fhc,hc->fh", Wh, att_dst)         # [F_in, H]
    usrc_rows = jnp.einsum("fhc,hc->hf", Wh, att_src)         # [H, F_in]
    wfused = jnp.concatenate([W.T, udst_cols], axis=1)        # [F_in, H*C + H]
    wfc = wfc_t.T                                             # [H*C, num_classes]

    p = jnp.zeros((P_ROWS, LANES), jnp.float32)
    p = p.at[ROW_WFUSED:ROW_WFUSED + F_IN, :H * C + H].set(wfused)
    p = p.at[ROW_USRC:ROW_USRC + H, :F_IN].set(usrc_rows)
    p = p.at[ROW_BGAT, :H * C].set(bgat[0])
    p = p.at[ROW_BFC, :].set(jnp.full((LANES,), -1e30, jnp.float32))  # mask padded classes
    p = p.at[ROW_BFC, :NUM_CLASSES].set(bfc[0])
    p = p.at[ROW_WFC:ROW_WFC + H * C, :NUM_CLASSES].set(wfc)          # padded cols stay 0
    return p


def gat_model_forward(x_b, adj, params):
    """Host wrapper: stack & pad graphs, build the block-diag mask, run the kernel, unpad."""
    bsz = x_b.shape[0]
    assert bsz % GRAPHS_PER_STEP == 0
    num_steps = bsz // GRAPHS_PER_STEP
    rows_step = GRAPHS_PER_STEP * N_PAD
    total_rows = bsz * N_PAD

    # Stack all graphs along the sublane axis: [B*N_PAD, F_in].
    x_pad = jnp.zeros((bsz, N_PAD, F_IN), jnp.float32).at[:, :N].set(x_b)
    x_flat = x_pad.reshape(total_rows, F_IN)

    # One block-diagonal additive mask per grid step (shared by every step since all
    # graphs use the same adjacency).  Padded rows keep a self-loop so softmax stays finite.
    block = jnp.full((N_PAD, N_PAD), -1e30, jnp.float32)
    block = block.at[:N, :N].set(jnp.where(adj > 0, 0.0, -1e30))
    block = block.at[jnp.arange(N, N_PAD), jnp.arange(N, N_PAD)].set(0.0)
    mask = jnp.full((rows_step, rows_step), -1e30, jnp.float32)
    for g in range(GRAPHS_PER_STEP):
        mask = mask.at[g * N_PAD:(g + 1) * N_PAD, g * N_PAD:(g + 1) * N_PAD].set(block)

    out = pl.pallas_call(
        gat_model_kernel,
        out_shape=jax.ShapeDtypeStruct((total_rows, LANES), jnp.float32),
        grid=(num_steps,),
        in_specs=[
            pl.BlockSpec((rows_step, F_IN), lambda s: (s, 0)),       # stacked node features
            pl.BlockSpec((rows_step, rows_step), lambda s: (0, 0)),  # block-diag mask (VMEM-resident)
            pl.BlockSpec((P_ROWS, LANES), lambda s: (0, 0)),         # packed params (VMEM-resident)
        ],
        out_specs=pl.BlockSpec((rows_step, LANES), lambda s: (s, 0)),
        compiler_params=pltpu.CompilerParams(dimension_semantics=("parallel",)),
    )(x_flat, mask, params)

    out = out[:, :NUM_CLASSES].reshape(bsz, N_PAD, NUM_CLASSES)
    return out[:, :N, :]


def reference_forward(x, adj, W, att_src, att_dst, bgat, wfc, bfc):
    """Pure-JAX reference (from raw, unfolded parameters) for a sanity check."""
    xp = (x @ W.T).reshape(N, H, C)
    a_src = jnp.einsum("nhc,hc->nh", xp, att_src)
    a_dst = jnp.einsum("nhc,hc->nh", xp, att_dst)
    outs = []
    for h in range(H):
        e = a_dst[:, h][:, None] + a_src[:, h][None, :]
        e = jnp.where(e > 0, e, NEG_SLOPE * e)
        e = jnp.where(adj > 0, e, -jnp.inf)
        attn = jax.nn.softmax(e, axis=1)
        outs.append(attn @ xp[:, h, :])
    gat = jnp.maximum(jnp.concatenate(outs, axis=1) + bgat, 0.0)
    logits = gat @ wfc + bfc
    return jax.nn.log_softmax(logits, axis=1)


if __name__ == "__main__":
    key = jax.random.PRNGKey(0)
    keys = jax.random.split(key, 8)

    # ---- data (mirrors the PyTorch snippet; batched over B graphs for throughput) ----
    x_b = jax.random.normal(keys[0], (B, N, F_IN), jnp.float32)
    edge_index = jnp.array([[0, 1, 1, 2], [1, 0, 2, 1]], dtype=jnp.int32)

    # dense adjacency: adj[dst, src] = 1, plus self loops (PyG add_self_loops=True)
    adj = jnp.zeros((N, N), jnp.float32)
    adj = adj.at[edge_index[1], edge_index[0]].set(1.0)
    adj = adj.at[jnp.arange(N), jnp.arange(N)].set(1.0)

    # ---- deterministic parameter init ----
    W = jax.random.normal(keys[1], (H * C, F_IN), jnp.float32) * 0.1     # GATConv lin weight
    att_src = jax.random.normal(keys[2], (H, C), jnp.float32) * 0.1
    att_dst = jax.random.normal(keys[3], (H, C), jnp.float32) * 0.1
    bgat = jax.random.normal(keys[4], (1, H * C), jnp.float32) * 0.1     # GATConv bias
    wfc_t = jax.random.normal(keys[5], (NUM_CLASSES, H * C), jnp.float32) * 0.1  # fc weight
    bfc = jax.random.normal(keys[6], (1, NUM_CLASSES), jnp.float32) * 0.1        # fc bias

    params = pack_params(W, att_src, att_dst, bgat, wfc_t, bfc)

    out = gat_model_forward(x_b, adj, params)
    jax.block_until_ready(out)

    assert out.shape == (B, N, NUM_CLASSES)
    for b in range(B):
        ref = reference_forward(x_b[b], adj, W, att_src, att_dst, bgat, wfc_t.T, bfc)
        assert jnp.allclose(out[b], ref, atol=1e-4, rtol=1e-4), (b, out[b], ref)

    print("KERNEL_OK")
</pallas_src>

<mosaic_0001>
module attributes {stable_mosaic.version = 11 : i64} {
  func.func @gat_model_kernel(%arg0: i32, %arg1: memref<32x16xf32, #tpu.memory_space<vmem>>, %arg2: memref<32x32xf32, #tpu.memory_space<vmem>>, %arg3: memref<40x128xf32, #tpu.memory_space<vmem>>, %arg4: memref<32x128xf32, #tpu.memory_space<vmem>>) attributes {dimension_semantics = [#tpu.dimension_semantics<parallel>], iteration_bounds = array<i64: 1>, scalar_prefetch = 0 : i64, scratch_operands = 0 : i64, tpu.core_type = #tpu.core_type<tc>, window_params = [{transform_indices = @transform_0, window_bounds = array<i64: 32, 16>}, {pipeline_mode = #tpu.pipeline_mode<synchronous>, transform_indices = @transform_1, window_bounds = array<i64: 32, 32>}, {pipeline_mode = #tpu.pipeline_mode<synchronous>, transform_indices = @transform_2, window_bounds = array<i64: 40, 128>}, {transform_indices = @transform_3, window_bounds = array<i64: 32, 128>}]} {
    %c0 = arith.constant 0 : index
    %c0_0 = arith.constant 0 : index
    %0 = vector.load %arg1[%c0, %c0_0] : memref<32x16xf32, #tpu.memory_space<vmem>>, vector<32x16xf32>
    %c0_1 = arith.constant 0 : index
    %c0_2 = arith.constant 0 : index
    %1 = vector.load %arg2[%c0_1, %c0_2] : memref<32x32xf32, #tpu.memory_space<vmem>>, vector<32x32xf32>
    %c0_3 = arith.constant 0 : index
    %c0_4 = arith.constant 0 : index
    %2 = vector.load %arg3[%c0_3, %c0_4] : memref<40x128xf32, #tpu.memory_space<vmem>>, vector<16x128xf32>
    %cst = arith.constant dense<0.000000e+00> : vector<32x128xf32>
    %3 = tpu.matmul %0, %2, %cst {dimension_numbers = #tpu.dot_dimension_numbers<[1], [0], [0], [1], [0, 0, 1, 1], [], []>} : vector<32x16xf32>, vector<16x128xf32>, vector<32x128xf32> -> vector<32x128xf32>
    %c16 = arith.constant 16 : index
    %c0_5 = arith.constant 0 : index
    %4 = vector.load %arg3[%c16, %c0_5] : memref<40x128xf32, #tpu.memory_space<vmem>>, vector<2x16xf32>
    %cst_6 = arith.constant dense<0.000000e+00> : vector<2x32xf32>
    %5 = tpu.matmul %4, %0, %cst_6 {dimension_numbers = #tpu.dot_dimension_numbers<[1], [1], [0], [0], [0, 0, 1, 0], [], []>} : vector<2x16xf32>, vector<32x16xf32>, vector<2x32xf32> -> vector<2x32xf32>
    %c18 = arith.constant 18 : index
    %c0_7 = arith.constant 0 : index
    %6 = vector.load %arg3[%c18, %c0_7] : memref<40x128xf32, #tpu.memory_space<vmem>>, vector<1x16xf32>
    %c19 = arith.constant 19 : index
    %c0_8 = arith.constant 0 : index
    %7 = vector.load %arg3[%c19, %c0_8] : memref<40x128xf32, #tpu.memory_space<vmem>>, vector<1x128xf32>
    %8 = vector.shape_cast %7 : vector<1x128xf32> to vector<1x128xf32>
    %9 = vector.broadcast %8 : vector<1x128xf32> to vector<32x128xf32>
    %10 = vector.extract_strided_slice %3 {offsets = [0, 0], sizes = [32, 8], strides = [1, 1]} : vector<32x128xf32> to vector<32x8xf32>
    %11 = vector.extract_strided_slice %3 {offsets = [0, 16], sizes = [32, 1], strides = [1, 1]} : vector<32x128xf32> to vector<32x1xf32>
    %12 = vector.extract_strided_slice %5 {offsets = [0, 0], sizes = [1, 32], strides = [1, 1]} : vector<2x32xf32> to vector<1x32xf32>
    %13 = vector.broadcast %11 : vector<32x1xf32> to vector<32x32xf32>
    %14 = vector.broadcast %12 : vector<1x32xf32> to vector<32x32xf32>
    %15 = arith.addf %13, %14 : vector<32x32xf32>
    %cst_9 = arith.constant 2.000000e-01 : f32
    %16 = vector.broadcast %cst_9 : f32 to vector<32x32xf32>
    %17 = arith.mulf %16, %15 : vector<32x32xf32>
    %18 = arith.maximumf %15, %17 : vector<32x32xf32>
    %19 = arith.addf %18, %1 : vector<32x32xf32>
    %cst_10 = arith.constant dense<0xFF800000> : vector<32xf32>
    %20 = vector.multi_reduction <maximumf>, %19, %cst_10 [1] : vector<32x32xf32> to vector<32xf32>
    %21 = vector.shape_cast %20 : vector<32xf32> to vector<32x1xf32>
    %22 = vector.broadcast %21 : vector<32x1xf32> to vector<32x32xf32>
    %23 = arith.subf %19, %22 : vector<32x32xf32>
    %24 = math.exp %23 : vector<32x32xf32>
    %cst_11 = arith.constant dense<0.000000e+00> : vector<32xf32>
    %25 = vector.multi_reduction <add>, %24, %cst_11 [1] : vector<32x32xf32> to vector<32xf32>
    %26 = vector.shape_cast %25 : vector<32xf32> to vector<32x1xf32>
    %cst_12 = arith.constant dense<0.000000e+00> : vector<32x8xf32>
    %27 = tpu.matmul %24, %10, %cst_12 {dimension_numbers = #tpu.dot_dimension_numbers<[1], [0], [0], [1], [0, 0, 1, 1], [], []>} : vector<32x32xf32>, vector<32x8xf32>, vector<32x8xf32> -> vector<32x8xf32>
    %28 = tpu.reciprocal %26 {approx = true} : vector<32x1xf32> -> vector<32x1xf32>
    %29 = arith.mulf %26, %28 : vector<32x1xf32>
    %cst_13 = arith.constant 2.000000e+00 : f32
    %30 = vector.broadcast %cst_13 : f32 to vector<32x1xf32>
    %31 = arith.subf %30, %29 : vector<32x1xf32>
    %32 = arith.mulf %28, %31 : vector<32x1xf32>
    %33 = vector.broadcast %32 : vector<32x1xf32> to vector<32x8xf32>
    %34 = arith.mulf %27, %33 : vector<32x8xf32>
    %35 = vector.extract_strided_slice %6 {offsets = [0, 0], sizes = [1, 8], strides = [1, 1]} : vector<1x16xf32> to vector<1x8xf32>
    %36 = vector.broadcast %35 : vector<1x8xf32> to vector<32x8xf32>
    %37 = arith.addf %34, %36 : vector<32x8xf32>
    %cst_14 = arith.constant 0.000000e+00 : f32
    %38 = vector.broadcast %cst_14 : f32 to vector<32x8xf32>
    %39 = arith.maximumf %37, %38 : vector<32x8xf32>
    %c24 = arith.constant 24 : index
    %c0_15 = arith.constant 0 : index
    %40 = vector.load %arg3[%c24, %c0_15] : memref<40x128xf32, #tpu.memory_space<vmem>>, vector<8x128xf32>
    %cst_16 = arith.constant dense<0.000000e+00> : vector<32x128xf32>
    %41 = tpu.matmul %39, %40, %cst_16 {dimension_numbers = #tpu.dot_dimension_numbers<[1], [0], [0], [1], [0, 0, 1, 1], [], []>} : vector<32x8xf32>, vector<8x128xf32>, vector<32x128xf32> -> vector<32x128xf32>
    %42 = arith.addf %9, %41 : vector<32x128xf32>
    %43 = vector.extract_strided_slice %3 {offsets = [0, 8], sizes = [32, 8], strides = [1, 1]} : vector<32x128xf32> to vector<32x8xf32>
    %44 = vector.extract_strided_slice %3 {offsets = [0, 17], sizes = [32, 1], strides = [1, 1]} : vector<32x128xf32> to vector<32x1xf32>
    %45 = vector.extract_strided_slice %5 {offsets = [1, 0], sizes = [1, 32], strides = [1, 1]} : vector<2x32xf32> to vector<1x32xf32>
    %46 = vector.broadcast %44 : vector<32x1xf32> to vector<32x32xf32>
    %47 = vector.broadcast %45 : vector<1x32xf32> to vector<32x32xf32>
    %48 = arith.addf %46, %47 : vector<32x32xf32>
    %cst_17 = arith.constant 2.000000e-01 : f32
    %49 = vector.broadcast %cst_17 : f32 to vector<32x32xf32>
    %50 = arith.mulf %49, %48 : vector<32x32xf32>
    %51 = arith.maximumf %48, %50 : vector<32x32xf32>
    %52 = arith.addf %51, %1 : vector<32x32xf32>
    %cst_18 = arith.constant dense<0xFF800000> : vector<32xf32>
    %53 = vector.multi_reduction <maximumf>, %52, %cst_18 [1] : vector<32x32xf32> to vector<32xf32>
    %54 = vector.shape_cast %53 : vector<32xf32> to vector<32x1xf32>
    %55 = vector.broadcast %54 : vector<32x1xf32> to vector<32x32xf32>
    %56 = arith.subf %52, %55 : vector<32x32xf32>
    %57 = math.exp %56 : vector<32x32xf32>
    %cst_19 = arith.constant dense<0.000000e+00> : vector<32xf32>
    %58 = vector.multi_reduction <add>, %57, %cst_19 [1] : vector<32x32xf32> to vector<32xf32>
    %59 = vector.shape_cast %58 : vector<32xf32> to vector<32x1xf32>
    %cst_20 = arith.constant dense<0.000000e+00> : vector<32x8xf32>
    %60 = tpu.matmul %57, %43, %cst_20 {dimension_numbers = #tpu.dot_dimension_numbers<[1], [0], [0], [1], [0, 0, 1, 1], [], []>} : vector<32x32xf32>, vector<32x8xf32>, vector<32x8xf32> -> vector<32x8xf32>
    %61 = tpu.reciprocal %59 {approx = true} : vector<32x1xf32> -> vector<32x1xf32>
    %62 = arith.mulf %59, %61 : vector<32x1xf32>
    %cst_21 = arith.constant 2.000000e+00 : f32
    %63 = vector.broadcast %cst_21 : f32 to vector<32x1xf32>
    %64 = arith.subf %63, %62 : vector<32x1xf32>
    %65 = arith.mulf %61, %64 : vector<32x1xf32>
    %66 = vector.broadcast %65 : vector<32x1xf32> to vector<32x8xf32>
    %67 = arith.mulf %60, %66 : vector<32x8xf32>
    %68 = vector.extract_strided_slice %6 {offsets = [0, 8], sizes = [1, 8], strides = [1, 1]} : vector<1x16xf32> to vector<1x8xf32>
    %69 = vector.broadcast %68 : vector<1x8xf32> to vector<32x8xf32>
    %70 = arith.addf %67, %69 : vector<32x8xf32>
    %cst_22 = arith.constant 0.000000e+00 : f32
    %71 = vector.broadcast %cst_22 : f32 to vector<32x8xf32>
    %72 = arith.maximumf %70, %71 : vector<32x8xf32>
    %c32 = arith.constant 32 : index
    %c0_23 = arith.constant 0 : index
    %73 = vector.load %arg3[%c32, %c0_23] : memref<40x128xf32, #tpu.memory_space<vmem>>, vector<8x128xf32>
    %cst_24 = arith.constant dense<0.000000e+00> : vector<32x128xf32>
    %74 = tpu.matmul %72, %73, %cst_24 {dimension_numbers = #tpu.dot_dimension_numbers<[1], [0], [0], [1], [0, 0, 1, 1], [], []>} : vector<32x8xf32>, vector<8x128xf32>, vector<32x128xf32> -> vector<32x128xf32>
    %75 = arith.addf %42, %74 : vector<32x128xf32>
    %cst_25 = arith.constant dense<0xFF800000> : vector<32xf32>
    %76 = vector.multi_reduction <maximumf>, %75, %cst_25 [1] : vector<32x128xf32> to vector<32xf32>
    %77 = vector.shape_cast %76 : vector<32xf32> to vector<32x1xf32>
    %78 = vector.broadcast %77 : vector<32x1xf32> to vector<32x128xf32>
    %79 = arith.subf %75, %78 : vector<32x128xf32>
    %80 = math.exp %79 : vector<32x128xf32>
    %cst_26 = arith.constant dense<0.000000e+00> : vector<32xf32>
    %81 = vector.multi_reduction <add>, %80, %cst_26 [1] : vector<32x128xf32> to vector<32xf32>
    %82 = vector.shape_cast %81 : vector<32xf32> to vector<32x1xf32>
    %83 = math.log %82 : vector<32x1xf32>
    %84 = vector.broadcast %83 : vector<32x1xf32> to vector<32x128xf32>
    %85 = arith.subf %79, %84 : vector<32x128xf32>
    %c0_27 = arith.constant 0 : index
    %c0_28 = arith.constant 0 : index
    %86 = vector.load %arg4[%c0_27, %c0_28] : memref<32x128xf32, #tpu.memory_space<vmem>>, vector<32x128xf32>
    tpu.vector_store %arg4[%c0_27, %c0_28], %85 {strides = array<i32>} : memref<32x128xf32, #tpu.memory_space<vmem>>, vector<32x128xf32>,
    return
  }
  func.func @transform_0(%arg0: i32) -> (i32, i32) {
    %c0_i32 = arith.constant 0 : i32
    %c0_i32_0 = arith.constant 0 : i32
    return %arg0, %c0_i32 : i32, i32
  }
  func.func @transform_1(%arg0: i32) -> (i32, i32) {
    %c0_i32 = arith.constant 0 : i32
    %c0_i32_0 = arith.constant 0 : i32
    %c0_i32_1 = arith.constant 0 : i32
    return %c0_i32, %c0_i32_0 : i32, i32
  }
  func.func @transform_2(%arg0: i32) -> (i32, i32) {
    %c0_i32 = arith.constant 0 : i32
    %c0_i32_0 = arith.constant 0 : i32
    %c0_i32_1 = arith.constant 0 : i32
    return %c0_i32, %c0_i32_0 : i32, i32
  }
  func.func @transform_3(%arg0: i32) -> (i32, i32) {
    %c0_i32 = arith.constant 0 : i32
    %c0_i32_0 = arith.constant 0 : i32
    return %arg0, %c0_i32 : i32, i32
  }
}

</mosaic_0001>

<llo_original>
// kernel: tpu_custom_call.1
$region0: #{tpu_custom_call.1}
  #allocation0 [shape = 'u32[]', space=smem, size = 0x4, offset = 0x4, fixed_abs, tag = 'smem constant byte address 0x4 - core index']
  #allocation1 [shape = 'u32[72,128]{1,0:T(1,128)}', space=vmem, size = 0x9000, scoped, tag = 'internal scratch']
  %s0 = inlined_call_operand.vmem [shape: f32[32,16], index: 0, kind: input, shape index: {}]
  %s1 = inlined_call_operand.hbm [shape: f32[32,32], index: 1, kind: input, shape index: {}]
  %s2 = inlined_call_operand.vmem [shape: f32[40,128], index: 2, kind: input, shape index: {}]
  %s3 = inlined_call_operand.hbm [shape: f32[32,128], index: 3, kind: output, shape index: {}]
  %s4 = sld [smem:[#allocation0]]
  $region26: #{tpu_custom_call.1} parent=0
    _
  %s6 = ssub.s32 1, %s4
  %s7 = scalar_select 0, %s6, %s4
  $region1: #{tpu_custom_call.1} parent=0
    #allocation2 [shape = 'u8[16384]{0}', space=vmem, size = 0x4000, scoped, tag = 'input window, operand 1, single buffered']
    #allocation3 [shape = 's32[1]{0}', space=sflag, size = 0x4, scoped, tag = 'scoped memory for tpu_custom_call.1']
    #allocation4 [shape = 's32[1]{0}', space=sflag, size = 0x4, scoped, tag = 'scoped memory for tpu_custom_call.1']
    #allocation5 [shape = 'u8[16384]{0}', space=vmem, size = 0x4000, scoped, tag = 'output window, operand 0, single buffered']
    %8 = vsyncpa [#allocation3], 0
    %9 = vsyncpa [#allocation4], 0
    // Predicated region
    $region2: #{tpu_custom_call.1} parent=1 // pred_check
      _
    $region3: #{tpu_custom_call.1} parent=1 // pred_check_branch
      %11 = sbr.rel (0) target = $region5
    $region4: #{tpu_custom_call.1} parent=1 // pred_region
      _
    $region5: #{tpu_custom_call.1} parent=1 // pred_fallthru
      _
    // Predicated region
    $region6: #{tpu_custom_call.1} parent=1 // pred_check
      _
    $region7: #{tpu_custom_call.1} parent=1 // pred_check_branch
      %13 = sbr.rel (0) target = $region9
    $region8: #{tpu_custom_call.1} parent=1 // pred_region
      %15 = vsyncadd [#allocation3], 0
      %s16 = sshll.u32 %s1, 4
      %s17 = int_to_ptr.hbm [resolvable:$true] %s16
      %s18 = sshll.u32 [#allocation2], 4
      %s19 = int_to_ptr.vmem [resolvable:$true] %s18
      %24 = dma.hbm_to_vmem [thread:$0]  %s17, 512, %s19, [#allocation3], 128, 128, 8
    $region9: #{tpu_custom_call.1} parent=1 // pred_fallthru
      _
    // Predicated region
    $region10: #{tpu_custom_call.1} parent=1 // pred_check
      _
    $region11: #{tpu_custom_call.1} parent=1 // pred_check_branch
      %26 = sbr.rel (0) target = $region13
    $region12: #{tpu_custom_call.1} parent=1 // pred_region
      _
    $region13: #{tpu_custom_call.1} parent=1 // pred_fallthru
      _
    // Predicated region
    $region14: #{tpu_custom_call.1} parent=1 // pred_check
      _
    $region15: #{tpu_custom_call.1} parent=1 // pred_check_branch
      %28 = sbr.rel (0) target = $region17
    $region16: #{tpu_custom_call.1} parent=1 // pred_region
      %30 = dma.done [#allocation3], 512
    $region17: #{tpu_custom_call.1} parent=1 // pred_fallthru
      _
    %v31 = vld [vmem:[%s0] sm:$0xff]
    %v32 = vld [vmem:[%s0 + $0x8] sm:$0xff]
    %v33 = vld [vmem:[%s0 + $0x10] sm:$0xff]
    %v34 = vld [vmem:[%s0 + $0x18] sm:$0xff]
    %v35 = vld [vmem:[#allocation2] sm:$0xff]
    %v36 = vld [vmem:[#allocation2 + $0x8] sm:$0xff]
    %v37 = vld [vmem:[#allocation2 + $0x10] sm:$0xff]
    %v38 = vld [vmem:[#allocation2 + $0x18] sm:$0xff]
    %v39 = vld [vmem:[%s2] sm:$0xff]
    %v40 = vld [vmem:[%s2 + $0x8] sm:$0xff]
    %vm41 = vcmask 130048
    %v43 = vsel %vm41, %v31, 0
    %v46 = vsel %vm41, %v32, 0
    %v49 = vsel %vm41, %v33, 0
    %v52 = vsel %vm41, %v34, 0
    %54 = vmatpush.msra.mxu0 0.0
    %55 = vmatpush.msra.mxu0 0.0
    %56 = vmatpush.msra.mxu0 0.0
    %57 = vmatpush.msra.mxu0 0.0
    %58 = vmatpush.msra.mxu0 0.0
    %59 = vmatpush.msra.mxu0 0.0
    %60 = vmatpush.msra.mxu0 0.0
    %61 = vmatpush.msra.mxu0 0.0
    %62 = vmatpush.msra.mxu0 0.0
    %63 = vmatpush.msra.mxu0 0.0
    %64 = vmatpush.msra.mxu0 0.0
    %65 = vmatpush.msra.mxu0 0.0
    %66 = vmatpush.msra.mxu0 0.0
    %67 = vmatpush.msra.mxu0 0.0
    %68 = vmatpush.msra.mxu0 %v40
    %69 = vmatpush.msra.mxu0 %v39
    %70 = vmatmul.f32.gmra.mxu0 %v43
    %v71 = vpop.f32.mrf.mxu0
    %v72 = vadd.f32 0.0, %v71
    %73 = vmatmul.f32.gmra.mxu0 %v46
    %v74 = vpop.f32.mrf.mxu0
    %v75 = vadd.f32 0.0, %v74
    %76 = vmatmul.f32.gmra.mxu0 %v49
    %v77 = vpop.f32.mrf.mxu0
    %v78 = vadd.f32 0.0, %v77
    %79 = vmatmul.f32.gmra.mxu0 %v52
    %v80 = vpop.f32.mrf.mxu0
    %v81 = vadd.f32 0.0, %v80
    %82 = vdwg.mxu0
    %v83 = vld [vmem:[%s2 + $0x10] sm:$0x3]
    %v85 = vsel %vm41, %v83, 0
    %87 = vmatpush.xpose.msra.mxu0 0.0
    %88 = vmatpush.xpose.msra.mxu0 0.0
    %89 = vmatpush.xpose.msra.mxu0 0.0
    %90 = vmatpush.xpose.msra.mxu0 0.0
    %91 = vmatpush.xpose.msra.mxu0 0.0
    %92 = vmatpush.xpose.msra.mxu0 0.0
    %93 = vmatpush.xpose.msra.mxu0 0.0
    %94 = vmatpush.xpose.msra.mxu0 0.0
    %95 = vmatpush.xpose.msra.mxu0 0.0
    %96 = vmatpush.xpose.msra.mxu0 0.0
    %97 = vmatpush.xpose.msra.mxu0 0.0
    %98 = vmatpush.xpose.msra.mxu0 0.0
    %99 = vmatpush.xpose.msra.mxu0 %v52
    %100 = vmatpush.xpose.msra.mxu0 %v49
    %101 = vmatpush.xpose.msra.mxu0 %v46
    %102 = vmatpush.xpose.msra.mxu0 %v43
    %103 = vmatmul.f32.gmra.mxu0 %v85
    %v104 = vpop.f32.mrf.mxu0
    %v105 = vadd.f32 0.0, %v104
    %106 = vdwg.mxu0
    %v107 = vld [vmem:[%s2 + $0x12] sm:$0x1]
    %v108 = vld [vmem:[%s2 + $0x13] sm:$0x1]
    %v109 = vperm.slane %v108, 0
    %111 = vset.pattern.permute.xlu0 16
    %112 = vperm.xlu0 %111, %v72
    %v113 = vpop.permute.xlu0 %112
    %116 = vset.pattern.permute.xlu0 16
    %117 = vperm.xlu0 %116, %v75
    %v118 = vpop.permute.xlu0 %117
    %121 = vset.pattern.permute.xlu0 16
    %122 = vperm.xlu0 %121, %v78
    %v123 = vpop.permute.xlu0 %122
    %126 = vset.pattern.permute.xlu0 16
    %127 = vperm.xlu0 %126, %v81
    %v128 = vpop.permute.xlu0 %127
    %v130 = vperm.slane %v105, 0
    %v131 = vadd.f32 %v113, %v130
    %v132 = vadd.f32 %v118, %v130
    %v133 = vadd.f32 %v123, %v130
    %v134 = vadd.f32 %v128, %v130
    %v135 = vmul.f32 %v131, 0.2
    %v136 = vmul.f32 %v132, 0.2
    %v137 = vmul.f32 %v133, 0.2
    %v138 = vmul.f32 %v134, 0.2
    %v139 = vmax.f32 %v131, %v135
    %v140 = vmax.f32 %v132, %v136
    %v141 = vmax.f32 %v133, %v137
    %v142 = vmax.f32 %v134, %v138
    %v143 = vadd.f32 %v139, %v35
    %v144 = vadd.f32 %v140, %v36
    %v145 = vadd.f32 %v141, %v37
    %v146 = vadd.f32 %v142, %v38
    %vm147 = vcmask 261120
    %v148 = vsel %vm147, %v143, -inf
    %149 = vmax.xlane.f32.xlu0 %v148
    %v150 = vpop.xlane.xlu0 %149
    %v151 = vsel %vm147, %v144, -inf
    %152 = vmax.xlane.f32.xlu0 %v151
    %v153 = vpop.xlane.xlu0 %152
    %v154 = vsel %vm147, %v145, -inf
    %155 = vmax.xlane.f32.xlu0 %v154
    %v156 = vpop.xlane.xlu0 %155
    %v157 = vsel %vm147, %v146, -inf
    %158 = vmax.xlane.f32.xlu0 %v157
    %v159 = vpop.xlane.xlu0 %158
    %v160 = vsub.f32 %v143, %v150
    %v161 = vsub.f32 %v144, %v153
    %v162 = vsub.f32 %v145, %v156
    %v163 = vsub.f32 %v146, %v159
    %v164 = vmul.f32 %v160, 1.442695
    %v165 = vpow.pop %v164
    %v166 = vmul.f32 %v161, 1.442695
    %v167 = vpow.pop %v166
    %v168 = vmul.f32 %v162, 1.442695
    %v169 = vpow.pop %v168
    %v170 = vmul.f32 %v163, 1.442695
    %v171 = vpow.pop %v170
    %v172 = vsel %vm147, %v165, 0.0
    %173 = vadd.xlane.f32.xlu0 %v172
    %v174 = vpop.xlane.xlu0 %173
    %v175 = vsel %vm147, %v167, 0.0
    %176 = vadd.xlane.f32.xlu0 %v175
    %v177 = vpop.xlane.xlu0 %176
    %v178 = vsel %vm147, %v169, 0.0
    %179 = vadd.xlane.f32.xlu0 %v178
    %v180 = vpop.xlane.xlu0 %179
    %v181 = vsel %vm147, %v171, 0.0
    %182 = vadd.xlane.f32.xlu0 %v181
    %v183 = vpop.xlane.xlu0 %182
    %v185 = vsel %vm147, %v165, 0
    %v188 = vsel %vm147, %v167, 0
    %v191 = vsel %vm147, %v169, 0
    %v194 = vsel %vm147, %v171, 0
    %196 = vmatpush.msra.mxu0 0.0
    %197 = vmatpush.msra.mxu0 0.0
    %198 = vmatpush.msra.mxu0 0.0
    %199 = vmatpush.msra.mxu0 0.0
    %200 = vmatpush.msra.mxu0 0.0
    %201 = vmatpush.msra.mxu0 0.0
    %202 = vmatpush.msra.mxu0 0.0
    %203 = vmatpush.msra.mxu0 0.0
    %204 = vmatpush.msra.mxu0 0.0
    %205 = vmatpush.msra.mxu0 0.0
    %206 = vmatpush.msra.mxu0 0.0
    %207 = vmatpush.msra.mxu0 0.0
    %208 = vmatpush.msra.mxu0 %v81
    %209 = vmatpush.msra.mxu0 %v78
    %210 = vmatpush.msra.mxu0 %v75
    %211 = vmatpush.msra.mxu0 %v72
    %212 = vmatmul.f32.gmra.mxu0 %v185
    %v213 = vpop.f32.mrf.mxu0
    %v214 = vadd.f32 0.0, %v213
    %215 = vmatmul.f32.gmra.mxu0 %v188
    %v216 = vpop.f32.mrf.mxu0
    %v217 = vadd.f32 0.0, %v216
    %218 = vmatmul.f32.gmra.mxu0 %v191
    %v219 = vpop.f32.mrf.mxu0
    %v220 = vadd.f32 0.0, %v219
    %221 = vmatmul.f32.gmra.mxu0 %v194
    %v222 = vpop.f32.mrf.mxu0
    %v223 = vadd.f32 0.0, %v222
    %224 = vdwg.mxu0
    %v225 = vrcp.pop %v174
    %v226 = vrcp.pop %v177
    %v227 = vrcp.pop %v180
    %v228 = vrcp.pop %v183
    %v229 = vmul.f32 %v174, %v225
    %v230 = vmul.f32 %v177, %v226
    %v231 = vmul.f32 %v180, %v227
    %v232 = vmul.f32 %v183, %v228
    %v233 = vsub.f32 2.0, %v229
    %v234 = vsub.f32 2.0, %v230
    %v235 = vsub.f32 2.0, %v231
    %v236 = vsub.f32 2.0, %v232
    %v237 = vmul.f32 %v225, %v233
    %v238 = vmul.f32 %v226, %v234
    %v239 = vmul.f32 %v227, %v235
    %v240 = vmul.f32 %v228, %v236
    %v241 = vmul.f32 %v214, %v237
    %v242 = vmul.f32 %v217, %v238
    %v243 = vmul.f32 %v220, %v239
    %v244 = vmul.f32 %v223, %v240
    %v245 = vperm.slane %v107, 0
    %v246 = vadd.f32 %v241, %v245
    %v247 = vadd.f32 %v242, %v245
    %v248 = vadd.f32 %v243, %v245
    %v249 = vadd.f32 %v244, %v245
    %v250 = vmax.f32 %v246, 0.0
    %v251 = vmax.f32 %v247, 0.0
    %v252 = vmax.f32 %v248, 0.0
    %v253 = vmax.f32 %v249, 0.0
    %v254 = vld [vmem:[%s2 + $0x18] sm:$0xff]
    %vm255 = vcmask 64512
    %v257 = vsel %vm255, %v250, 0
    %v260 = vsel %vm255, %v251, 0
    %v263 = vsel %vm255, %v252, 0
    %v266 = vsel %vm255, %v253, 0
    %268 = vmatpush.msra.mxu0 0.0
    %269 = vmatpush.msra.mxu0 0.0
    %270 = vmatpush.msra.mxu0 0.0
    %271 = vmatpush.msra.mxu0 0.0
    %272 = vmatpush.msra.mxu0 0.0
    %273 = vmatpush.msra.mxu0 0.0
    %274 = vmatpush.msra.mxu0 0.0
    %275 = vmatpush.msra.mxu0 0.0
    %276 = vmatpush.msra.mxu0 0.0
    %277 = vmatpush.msra.mxu0 0.0
    %278 = vmatpush.msra.mxu0 0.0
    %279 = vmatpush.msra.mxu0 0.0
    %280 = vmatpush.msra.mxu0 0.0
    %281 = vmatpush.msra.mxu0 0.0
    %282 = vmatpush.msra.mxu0 0.0
    %283 = vmatpush.msra.mxu0 %v254
    %284 = vmatmul.f32.gmra.mxu0 %v257
    %v285 = vpop.f32.mrf.mxu0
    %v286 = vadd.f32 0.0, %v285
    %287 = vmatmul.f32.gmra.mxu0 %v260
    %v288 = vpop.f32.mrf.mxu0
    %v289 = vadd.f32 0.0, %v288
    %290 = vmatmul.f32.gmra.mxu0 %v263
    %v291 = vpop.f32.mrf.mxu0
    %v292 = vadd.f32 0.0, %v291
    %293 = vmatmul.f32.gmra.mxu0 %v266
    %v294 = vpop.f32.mrf.mxu0
    %v295 = vadd.f32 0.0, %v294
    %296 = vdwg.mxu0
    %v297 = vadd.f32 %v109, %v286
    %v298 = vadd.f32 %v109, %v289
    %v299 = vadd.f32 %v109, %v292
    %v300 = vadd.f32 %v109, %v295
    %301 = vset.pattern.permute.xlu0 17
    %302 = vperm.xlu0 %301, %v72
    %v303 = vpop.permute.xlu0 %302
    %305 = vset.pattern.permute.xlu0 17
    %306 = vperm.xlu0 %305, %v75
    %v307 = vpop.permute.xlu0 %306
    %309 = vset.pattern.permute.xlu0 17
    %310 = vperm.xlu0 %309, %v78
    %v311 = vpop.permute.xlu0 %310
    %313 = vset.pattern.permute.xlu0 17
    %314 = vperm.xlu0 %313, %v81
    %v315 = vpop.permute.xlu0 %314
    %v317 = vperm.slane %v105, 1
    %v318 = vadd.f32 %v303, %v317
    %v319 = vadd.f32 %v307, %v317
    %v320 = vadd.f32 %v311, %v317
    %v321 = vadd.f32 %v315, %v317
    %v322 = vmul.f32 %v318, 0.2
    %v323 = vmul.f32 %v319, 0.2
    %v324 = vmul.f32 %v320, 0.2
    %v325 = vmul.f32 %v321, 0.2
    %v326 = vmax.f32 %v318, %v322
    %v327 = vmax.f32 %v319, %v323
    %v328 = vmax.f32 %v320, %v324
    %v329 = vmax.f32 %v321, %v325
    %v330 = vadd.f32 %v326, %v35
    %v331 = vadd.f32 %v327, %v36
    %v332 = vadd.f32 %v328, %v37
    %v333 = vadd.f32 %v329, %v38
    %v334 = vsel %vm147, %v330, -inf
    %335 = vmax.xlane.f32.xlu0 %v334
    %v336 = vpop.xlane.xlu0 %335
    %v337 = vsel %vm147, %v331, -inf
    %338 = vmax.xlane.f32.xlu0 %v337
    %v339 = vpop.xlane.xlu0 %338
    %v340 = vsel %vm147, %v332, -inf
    %341 = vmax.xlane.f32.xlu0 %v340
    %v342 = vpop.xlane.xlu0 %341
    %v343 = vsel %vm147, %v333, -inf
    %344 = vmax.xlane.f32.xlu0 %v343
    %v345 = vpop.xlane.xlu0 %344
    %v346 = vsub.f32 %v330, %v336
    %v347 = vsub.f32 %v331, %v339
    %v348 = vsub.f32 %v332, %v342
    %v349 = vsub.f32 %v333, %v345
    %v350 = vmul.f32 %v346, 1.442695
    %v351 = vpow.pop %v350
    %v352 = vmul.f32 %v347, 1.442695
    %v353 = vpow.pop %v352
    %v354 = vmul.f32 %v348, 1.442695
    %v355 = vpow.pop %v354
    %v356 = vmul.f32 %v349, 1.442695
    %v357 = vpow.pop %v356
    %v358 = vsel %vm147, %v351, 0.0
    %359 = vadd.xlane.f32.xlu0 %v358
    %v360 = vpop.xlane.xlu0 %359
    %v361 = vsel %vm147, %v353, 0.0
    %362 = vadd.xlane.f32.xlu0 %v361
    %v363 = vpop.xlane.xlu0 %362
    %v364 = vsel %vm147, %v355, 0.0
    %365 = vadd.xlane.f32.xlu0 %v364
    %v366 = vpop.xlane.xlu0 %365
    %v367 = vsel %vm147, %v357, 0.0
    %368 = vadd.xlane.f32.xlu0 %v367
    %v369 = vpop.xlane.xlu0 %368
    %370 = vrot.lane.b32.xlu0 %v72, 120
    %v371 = vpop.permute.xlu0 %370
    %372 = vrot.lane.b32.xlu0 %v75, 120
    %v373 = vpop.permute.xlu0 %372
    %374 = vrot.lane.b32.xlu0 %v78, 120
    %v375 = vpop.permute.xlu0 %374
    %376 = vrot.lane.b32.xlu0 %v81, 120
    %v377 = vpop.permute.xlu0 %376
    %v383 = vsel %vm147, %v351, 0
    %v386 = vsel %vm147, %v353, 0
    %v389 = vsel %vm147, %v355, 0
    %v392 = vsel %vm147, %v357, 0
    %394 = vmatpush.msra.mxu0 0.0
    %395 = vmatpush.msra.mxu0 0.0
    %396 = vmatpush.msra.mxu0 0.0
    %397 = vmatpush.msra.mxu0 0.0
    %398 = vmatpush.msra.mxu0 0.0
    %399 = vmatpush.msra.mxu0 0.0
    %400 = vmatpush.msra.mxu0 0.0
    %401 = vmatpush.msra.mxu0 0.0
    %402 = vmatpush.msra.mxu0 0.0
    %403 = vmatpush.msra.mxu0 0.0
    %404 = vmatpush.msra.mxu0 0.0
    %405 = vmatpush.msra.mxu0 0.0
    %406 = vmatpush.msra.mxu0 %v377
    %407 = vmatpush.msra.mxu0 %v375
    %408 = vmatpush.msra.mxu0 %v373
    %409 = vmatpush.msra.mxu0 %v371
    %410 = vmatmul.f32.gmra.mxu0 %v383
    %v411 = vpop.f32.mrf.mxu0
    %v412 = vadd.f32 0.0, %v411
    %413 = vmatmul.f32.gmra.mxu0 %v386
    %v414 = vpop.f32.mrf.mxu0
    %v415 = vadd.f32 0.0, %v414
    %416 = vmatmul.f32.gmra.mxu0 %v389
    %v417 = vpop.f32.mrf.mxu0
    %v418 = vadd.f32 0.0, %v417
    %419 = vmatmul.f32.gmra.mxu0 %v392
    %v420 = vpop.f32.mrf.mxu0
    %v421 = vadd.f32 0.0, %v420
    %422 = vdwg.mxu0
    %v423 = vrcp.pop %v360
    %v424 = vrcp.pop %v363
    %v425 = vrcp.pop %v366
    %v426 = vrcp.pop %v369
    %v427 = vmul.f32 %v360, %v423
    %v428 = vmul.f32 %v363, %v424
    %v429 = vmul.f32 %v366, %v425
    %v430 = vmul.f32 %v369, %v426
    %v431 = vsub.f32 2.0, %v427
    %v432 = vsub.f32 2.0, %v428
    %v433 = vsub.f32 2.0, %v429
    %v434 = vsub.f32 2.0, %v430
    %v435 = vmul.f32 %v423, %v431
    %v436 = vmul.f32 %v424, %v432
    %v437 = vmul.f32 %v425, %v433
    %v438 = vmul.f32 %v426, %v434
    %v439 = vmul.f32 %v412, %v435
    %v440 = vmul.f32 %v415, %v436
    %v441 = vmul.f32 %v418, %v437
    %v442 = vmul.f32 %v421, %v438
    %444 = vrot.lane.b32.xlu0 %v245, 120
    %v445 = vpop.permute.xlu0 %444
    %v447 = vadd.f32 %v439, %v445
    %v448 = vadd.f32 %v440, %v445
    %v449 = vadd.f32 %v441, %v445
    %v450 = vadd.f32 %v442, %v445
    %v451 = vmax.f32 %v447, 0.0
    %v452 = vmax.f32 %v448, 0.0
    %v453 = vmax.f32 %v449, 0.0
    %v454 = vmax.f32 %v450, 0.0
    %v455 = vld [vmem:[%s2 + $0x20] sm:$0xff]
    %v457 = vsel %vm255, %v451, 0
    %v460 = vsel %vm255, %v452, 0
    %v463 = vsel %vm255, %v453, 0
    %v466 = vsel %vm255, %v454, 0
    %468 = vmatpush.msra.mxu0 0.0
    %469 = vmatpush.msra.mxu0 0.0
    %470 = vmatpush.msra.mxu0 0.0
    %471 = vmatpush.msra.mxu0 0.0
    %472 = vmatpush.msra.mxu0 0.0
    %473 = vmatpush.msra.mxu0 0.0
    %474 = vmatpush.msra.mxu0 0.0
    %475 = vmatpush.msra.mxu0 0.0
    %476 = vmatpush.msra.mxu0 0.0
    %477 = vmatpush.msra.mxu0 0.0
    %478 = vmatpush.msra.mxu0 0.0
    %479 = vmatpush.msra.mxu0 0.0
    %480 = vmatpush.msra.mxu0 0.0
    %481 = vmatpush.msra.mxu0 0.0
    %482 = vmatpush.msra.mxu0 0.0
    %483 = vmatpush.msra.mxu0 %v455
    %484 = vmatmul.f32.gmra.mxu0 %v457
    %v485 = vpop.f32.mrf.mxu0
    %v486 = vadd.f32 0.0, %v485
    %487 = vmatmul.f32.gmra.mxu0 %v460
    %v488 = vpop.f32.mrf.mxu0
    %v489 = vadd.f32 0.0, %v488
    %490 = vmatmul.f32.gmra.mxu0 %v463
    %v491 = vpop.f32.mrf.mxu0
    %v492 = vadd.f32 0.0, %v491
    %493 = vmatmul.f32.gmra.mxu0 %v466
    %v494 = vpop.f32.mrf.mxu0
    %v495 = vadd.f32 0.0, %v494
    %496 = vdwg.mxu0
    %v497 = vadd.f32 %v297, %v486
    %v498 = vadd.f32 %v298, %v489
    %v499 = vadd.f32 %v299, %v492
    %v500 = vadd.f32 %v300, %v495
    %501 = vmax.xlane.f32.xlu0 %v497
    %v502 = vpop.xlane.xlu0 %501
    %503 = vmax.xlane.f32.xlu0 %v498
    %v504 = vpop.xlane.xlu0 %503
    %505 = vmax.xlane.f32.xlu0 %v499
    %v506 = vpop.xlane.xlu0 %505
    %507 = vmax.xlane.f32.xlu0 %v500
    %v508 = vpop.xlane.xlu0 %507
    %v509 = vsub.f32 %v497, %v502
    %v510 = vsub.f32 %v498, %v504
    %v511 = vsub.f32 %v499, %v506
    %v512 = vsub.f32 %v500, %v508
    %v513 = vmul.f32 %v509, 1.442695
    %v514 = vpow.pop %v513
    %v515 = vmul.f32 %v510, 1.442695
    %v516 = vpow.pop %v515
    %v517 = vmul.f32 %v511, 1.442695
    %v518 = vpow.pop %v517
    %v519 = vmul.f32 %v512, 1.442695
    %v520 = vpow.pop %v519
    %521 = vadd.xlane.f32.xlu0 %v514
    %v522 = vpop.xlane.xlu0 %521
    %523 = vadd.xlane.f32.xlu0 %v516
    %v524 = vpop.xlane.xlu0 %523
    %525 = vadd.xlane.f32.xlu0 %v518
    %v526 = vpop.xlane.xlu0 %525
    %527 = vadd.xlane.f32.xlu0 %v520
    %v528 = vpop.xlane.xlu0 %527
    %v529 = vlog2.pop %v522
    %v530 = vmul.f32 %v529, 0.6931472
    %v531 = vlog2.pop %v524
    %v532 = vmul.f32 %v531, 0.6931472
    %v533 = vlog2.pop %v526
    %v534 = vmul.f32 %v533, 0.6931472
    %v535 = vlog2.pop %v528
    %v536 = vmul.f32 %v535, 0.6931472
    %v537 = vsub.f32 %v509, %v530
    %v538 = vsub.f32 %v510, %v532
    %v539 = vsub.f32 %v511, %v534
    %v540 = vsub.f32 %v512, %v536
    %541 = vst [vmem:[#allocation5] sm:$0xff] %v537
    %542 = vst [vmem:[#allocation5 + $0x8] sm:$0xff] %v538
    %543 = vst [vmem:[#allocation5 + $0x10] sm:$0xff] %v539
    %544 = vst [vmem:[#allocation5 + $0x18] sm:$0xff] %v540
    // Predicated region
    $region18: #{tpu_custom_call.1} parent=1 // pred_check
      _
    $region19: #{tpu_custom_call.1} parent=1 // pred_check_branch
      %546 = sbr.rel (0) target = $region21
    $region20: #{tpu_custom_call.1} parent=1 // pred_region
      %548 = vsyncadd [#allocation4], 0
      %s549 = sshll.u32 [#allocation5], 4
      %s550 = int_to_ptr.vmem [resolvable:$true] %s549
      %s551 = sshll.u32 %s3, 4
      %s552 = int_to_ptr.hbm [resolvable:$true] %s551
      %557 = dma.vmem_to_hbm [thread:$0]  %s550, 512, %s552, [#allocation4], 128, 128, 8
    $region21: #{tpu_custom_call.1} parent=1 // pred_fallthru
      _
    // Predicated region
    $region22: #{tpu_custom_call.1} parent=1 // pred_check
      _
    $region23: #{tpu_custom_call.1} parent=1 // pred_check_branch
      %559 = sbr.rel (0) target = $region25
    $region24: #{tpu_custom_call.1} parent=1 // pred_region
      %561 = dma.done [#allocation4], 512
    $region25: #{tpu_custom_call.1} parent=1 // pred_fallthru
      _
    %562 = vsyncpa [#allocation3], 1
    %563 = vsyncpa [#allocation4], 1

</llo_original>
